<compile_context>
chip_gen: v7x
topology: tpu7x:2x2x1
jax: 0.10.0
libtpu: 0.0.40
codegen_flags: <defaults>
</compile_context>

<pallas_src>
import functools

import jax
import jax.numpy as jnp
from jax import lax
from jax.experimental import pallas as pl
from jax.experimental.pallas import tpu as pltpu

_MASK = -1e30  # finite "minus infinity": keeps masked lanes / rows NaN-free


def _soft_ce_kernel(x_ref, t_ref, o_ref, *scratch, r, tb, tc, cb,
                    n_rows, n_cols, mask_rows, mask_cols):
    """One (row-block, class-chunk) step; all r repeats handled in-block."""
    j = pl.program_id(0)

    x = x_ref[...].astype(jnp.float32)      # (r, tb, tc)
    t = t_ref[...].astype(jnp.float32)      # (tb, tc)

    if mask_cols:  # static flag; only reachable on the chunked (cb > 1) path
        cols = lax.broadcasted_iota(jnp.int32, (tb, tc), 1) + pl.program_id(1) * tc
        cvalid = cols < n_cols
        x = jnp.where(cvalid[None], x, _MASK)   # large-negative, not -inf
        t = jnp.where(cvalid, t, 0.0)

    def _row_mask(row_loss):
        # Row-tail garbage never crosses rows (all reductions above are per
        # row), so masking the tiny (r, tb, 1) loss vector is sufficient.
        if mask_rows:
            rows = lax.broadcasted_iota(jnp.int32, (tb, 1), 0) + j * tb
            row_loss = jnp.where((rows < n_rows)[None], row_loss, 0.0)
        return row_loss

    if cb == 1:
        # --- fast path: single class chunk, no scratch accumulators ---
        m = jnp.max(x, axis=-1, keepdims=True)                       # (r, tb, 1)
        xm = x - m
        l = jnp.sum(jnp.exp(xm), axis=-1, keepdims=True)             # (r, tb, 1)
        st = jnp.sum(t, axis=-1, keepdims=True)                      # (tb, 1)
        stx = jnp.sum(t[None] * xm, axis=-1, keepdims=True)          # (r, tb, 1)
        # sum_c(-t*log_softmax(x)) == log(l)*sum(t) - sum(t*(x - m))
        row_loss = jnp.log(l) * st[None] - stx
        o_ref[0, 0] = jnp.sum(_row_mask(row_loss))
    else:
        # --- chunked path: online logsumexp + rebased sum(t*(x - m)) ---
        m_sc, l_sc, st_sc, stx_sc = scratch
        c = pl.program_id(1)

        @pl.when(c == 0)
        def _():
            m_sc[...] = jnp.full_like(m_sc, _MASK)
            l_sc[...] = jnp.zeros_like(l_sc)
            st_sc[...] = jnp.zeros_like(st_sc)
            stx_sc[...] = jnp.zeros_like(stx_sc)

        m_prev = m_sc[...]                                            # (r, tb, 1)
        m_new = jnp.maximum(m_prev, jnp.max(x, axis=-1, keepdims=True))
        xm = x - m_new
        l_sc[...] = (l_sc[...] * jnp.exp(m_prev - m_new)
                     + jnp.sum(jnp.exp(xm), axis=-1, keepdims=True))
        st_prev = st_sc[...]                                          # (tb, 1)
        # rebase previous sum(t*(x - m_prev)) onto the new running max
        stx_sc[...] = (stx_sc[...] + (m_prev - m_new) * st_prev[None]
                       + jnp.sum(t[None] * xm, axis=-1, keepdims=True))
        st_sc[...] = st_prev + jnp.sum(t, axis=-1, keepdims=True)
        m_sc[...] = m_new

        @pl.when(c == cb - 1)
        def _():
            row_loss = jnp.log(l_sc[...]) * st_sc[...][None] - stx_sc[...]
            o_ref[0, 0] = jnp.sum(_row_mask(row_loss))


def _vmem_capacity_bytes():
    try:
        info = pltpu.get_tpu_info()
        cap = getattr(info, "vmem_capacity_bytes", None)
        if cap:
            return int(cap)
    except Exception:
        pass
    return 64 * 1024 * 1024   # conservative fallback (v7x per-core VMEM)


def _choose_tiles(n, c, r, x_dtype, t_dtype, block_classes):
    """Pick (row tile, class tile, vmem limit) from the chip's VMEM capacity."""
    isz_x = jnp.dtype(x_dtype).itemsize
    isz_t = jnp.dtype(t_dtype).itemsize
    row_mult = max(8, 32 // min(isz_x, isz_t))   # 8 for f32, 16 for bf16

    cap = _vmem_capacity_bytes()
    # tile-sizing target vs. the compiler scoped limit (limit keeps ~20% slack
    # above the target so f32 elementwise temporaries never trip the check).
    vmem_target = min((cap * 5) // 8, 80 * 1024 * 1024)   # 40 MiB v7x, 80 MiB v5e/v6e
    vmem_limit = min((cap * 3) // 4, 100 * 1024 * 1024)   # 48 MiB v7x, 96 MiB v5e/v6e
    # bytes per (tb*tc) element: double-buffered x & t blocks plus ~4 f32
    # x-sized and ~2 f32 t-sized in-kernel temporaries.
    per_elem = 2 * (r * isz_x + isz_t) + 16 * r + 8
    budget_elems = max(row_mult * 128,
                       (vmem_target - 2 * 1024 * 1024) // per_elem)

    # class (lane) tile
    if block_classes is not None:
        bc = max(128, (int(block_classes) // 128) * 128)   # respect the lane rule
        tc = c if bc >= c else bc
    elif row_mult * c <= budget_elems:
        tc = c                                             # single-chunk fast path
    else:
        tc = max(128, ((budget_elems // row_mult) // 128) * 128)

    # row (sublane) tile from the remaining budget
    tb = budget_elems // tc
    tb = max(row_mult, (tb // row_mult) * row_mult)
    if n <= row_mult:
        tb = n                     # full-dim block (exempt from the 8-row rule)
    else:
        tb = min(tb, (n // row_mult) * row_mult)
        if n >= 2 * row_mult:      # keep >= 2 row blocks -> megacore on v7x
            half = ((pl.cdiv(n, 2) + row_mult - 1) // row_mult) * row_mult
            tb = min(tb, half)
    return tb, tc, vmem_limit


def soft_target_cross_entropy(x, target, *, block_classes=None):
    """x: (N_rep, C) logits; target: (N, C) soft labels with N | N_rep."""
    n_rep, c = x.shape
    n, c_t = target.shape
    if c != c_t:
        raise ValueError("x and target must have the same class dimension")
    if n_rep % n != 0:
        raise ValueError("target batch must divide x batch (torch repeat semantics)")
    r = n_rep // n

    # torch's `target.repeat(r, 1)` pairing == viewing x as (r, N, C); the
    # reshape is a free row-major view, so no repeated-target HBM copy is made.
    x3 = x.reshape(r, n, c)

    tb, tc, vmem_limit = _choose_tiles(n, c, r, x.dtype, target.dtype, block_classes)
    nb = pl.cdiv(n, tb)
    cb = pl.cdiv(c, tc)
    mask_rows = (n % tb) != 0
    mask_cols = (c % tc) != 0

    kernel = functools.partial(
        _soft_ce_kernel, r=r, tb=tb, tc=tc, cb=cb, n_rows=n, n_cols=c,
        mask_rows=mask_rows, mask_cols=mask_cols)

    scratch_shapes = []
    if cb > 1:   # accumulators only needed when the class axis is chunked
        scratch_shapes = [
            pltpu.VMEM((r, tb, 1), jnp.float32),   # running max m
            pltpu.VMEM((r, tb, 1), jnp.float32),   # running sum-exp l
            pltpu.VMEM((tb, 1), jnp.float32),      # sum_c t (repeat-invariant)
            pltpu.VMEM((r, tb, 1), jnp.float32),   # sum_c t*(x - m)
        ]

    isz_x = jnp.dtype(x.dtype).itemsize
    isz_t = jnp.dtype(target.dtype).itemsize
    cost = pl.CostEstimate(
        flops=6 * r * n * c,
        transcendentals=r * n * c,
        bytes_accessed=r * n * c * isz_x + n * c * isz_t + nb * 4,
    )

    partials = pl.pallas_call(
        kernel,
        out_shape=jax.ShapeDtypeStruct((nb, 1), jnp.float32),
        grid_spec=pltpu.PrefetchScalarGridSpec(
            num_scalar_prefetch=0,
            grid=(nb, cb),
            in_specs=[
                # x viewed as (r, N, C): all repeats in one block -> target is
                # streamed from HBM exactly once.
                pl.BlockSpec((r, tb, tc), lambda j, k: (0, j, k)),
                pl.BlockSpec((tb, tc), lambda j, k: (j, k)),
            ],
            out_specs=pl.BlockSpec((1, 1), lambda j, k: (j, 0),
                                   memory_space=pltpu.SMEM),
            scratch_shapes=scratch_shapes,
        ),
        compiler_params=pltpu.CompilerParams(
            dimension_semantics=("parallel", "arbitrary"),
            vmem_limit_bytes=int(vmem_limit),
        ),
        cost_estimate=cost,
    )(x3, target)

    # tiny (nb, 1) partial-sum tensor -> finish the mean in plain JAX
    return jnp.sum(partials) / jnp.float32(n_rep)


def _reference(x, target):
    n_rep = x.shape[0]
    n = target.shape[0]
    if n != n_rep:
        target = jnp.tile(target, (n_rep // n, 1))
    logp = jax.nn.log_softmax(x.astype(jnp.float32), axis=-1)
    return jnp.mean(jnp.sum(-target.astype(jnp.float32) * logp, axis=-1))


if __name__ == "__main__":
    key = jax.random.PRNGKey(0)
    ks = jax.random.split(key, 8)

    # 1) repeat path (N_rep = 2 * N), lane-aligned C -> cb==1 fast path
    x1 = jax.random.normal(ks[0], (16, 128), dtype=jnp.float32)
    t1 = jax.nn.softmax(jax.random.normal(ks[1], (8, 128), jnp.float32), axis=-1)
    l1 = jax.block_until_ready(soft_target_cross_entropy(x1, t1))
    r1 = _reference(x1, t1)
    assert jnp.allclose(l1, r1, atol=1e-4, rtol=1e-4), (l1, r1)

    # 2) row-tail masking (N=12 not a multiple of the 8-row tile), fast path
    x2 = jax.random.normal(ks[2], (12, 200), dtype=jnp.float32)
    t2 = jax.nn.softmax(jax.random.normal(ks[3], (12, 200), jnp.float32), axis=-1)
    l2 = jax.block_until_ready(soft_target_cross_entropy(x2, t2))
    r2 = _reference(x2, t2)
    assert jnp.allclose(l2, r2, atol=1e-4, rtol=1e-4), (l2, r2)

    # 3) chunked online-logsumexp path + class-tail masking
    x3_ = jax.random.normal(ks[4], (8, 320), dtype=jnp.float32)
    t3 = jax.nn.softmax(jax.random.normal(ks[5], (8, 320), jnp.float32), axis=-1)
    l3 = jax.block_until_ready(soft_target_cross_entropy(x3_, t3, block_classes=128))
    r3 = _reference(x3_, t3)
    assert jnp.allclose(l3, r3, atol=1e-4, rtol=1e-4), (l3, r3)

    # 4) chunked path + repeat (r=2): exercises the rebased sum(t*(x-m)) accum
    x4 = jax.random.normal(ks[6], (16, 320), dtype=jnp.float32)
    l4 = jax.block_until_ready(soft_target_cross_entropy(x4, t3, block_classes=128))
    r4 = _reference(x4, t3)
    assert jnp.allclose(l4, r4, atol=1e-4, rtol=1e-4), (l4, r4)

    # 5) bf16 inputs (HBM traffic halved; f32 accumulation inside the kernel)
    x5 = x1.astype(jnp.bfloat16)
    t5 = t1.astype(jnp.bfloat16)
    l5 = jax.block_until_ready(soft_target_cross_entropy(x5, t5))
    r5 = _reference(x5, t5)
    assert jnp.allclose(l5, r5, atol=2e-3, rtol=2e-3), (l5, r5)

    print("KERNEL_OK")
</pallas_src>

<mosaic_0001>
module attributes {stable_mosaic.version = 11 : i64} {
  func.func @_soft_ce_kernel(%arg0: i32, %arg1: i32, %arg2: memref<2x8x128xf32, #tpu.memory_space<vmem>>, %arg3: memref<8x128xf32, #tpu.memory_space<vmem>>, %arg4: memref<1x1xf32, #tpu.memory_space<smem>>) attributes {dimension_semantics = [#tpu.dimension_semantics<parallel>, #tpu.dimension_semantics<arbitrary>], iteration_bounds = array<i64: 1, 1>, scalar_prefetch = 0 : i64, scratch_operands = 0 : i64, tpu.core_type = #tpu.core_type<tc>, window_params = [{transform_indices = @transform_0, window_bounds = array<i64: 2, 8, 128>}, {transform_indices = @transform_1, window_bounds = array<i64: 8, 128>}, {transform_indices = @transform_2, window_bounds = array<i64: 1, 1>}]} {
    %c0 = arith.constant 0 : index
    %c0_0 = arith.constant 0 : index
    %c0_1 = arith.constant 0 : index
    %0 = vector.load %arg2[%c0, %c0_0, %c0_1] : memref<2x8x128xf32, #tpu.memory_space<vmem>>, vector<2x8x128xf32>
    %c0_2 = arith.constant 0 : index
    %c0_3 = arith.constant 0 : index
    %1 = vector.load %arg3[%c0_2, %c0_3] : memref<8x128xf32, #tpu.memory_space<vmem>>, vector<8x128xf32>
    %cst = arith.constant dense<0xFF800000> : vector<2x8xf32>
    %2 = vector.multi_reduction <maximumf>, %0, %cst [2] : vector<2x8x128xf32> to vector<2x8xf32>
    %3 = vector.shape_cast %2 : vector<2x8xf32> to vector<2x8x1xf32>
    %4 = vector.broadcast %3 : vector<2x8x1xf32> to vector<2x8x128xf32>
    %5 = arith.subf %0, %4 : vector<2x8x128xf32>
    %6 = math.exp %5 : vector<2x8x128xf32>
    %cst_4 = arith.constant dense<0.000000e+00> : vector<2x8xf32>
    %7 = vector.multi_reduction <add>, %6, %cst_4 [2] : vector<2x8x128xf32> to vector<2x8xf32>
    %8 = vector.shape_cast %7 : vector<2x8xf32> to vector<2x8x1xf32>
    %cst_5 = arith.constant dense<0.000000e+00> : vector<8xf32>
    %9 = vector.multi_reduction <add>, %1, %cst_5 [1] : vector<8x128xf32> to vector<8xf32>
    %10 = vector.shape_cast %9 : vector<8xf32> to vector<8x1xf32>
    %11 = vector.shape_cast %1 : vector<8x128xf32> to vector<1x8x128xf32>
    %12 = vector.broadcast %11 : vector<1x8x128xf32> to vector<2x8x128xf32>
    %13 = arith.mulf %12, %5 : vector<2x8x128xf32>
    %cst_6 = arith.constant dense<0.000000e+00> : vector<2x8xf32>
    %14 = vector.multi_reduction <add>, %13, %cst_6 [2] : vector<2x8x128xf32> to vector<2x8xf32>
    %15 = vector.shape_cast %14 : vector<2x8xf32> to vector<2x8x1xf32>
    %16 = math.log %8 : vector<2x8x1xf32>
    %17 = vector.shape_cast %10 : vector<8x1xf32> to vector<1x8x1xf32>
    %18 = vector.broadcast %17 : vector<1x8x1xf32> to vector<2x8x1xf32>
    %19 = arith.mulf %16, %18 : vector<2x8x1xf32>
    %20 = arith.subf %19, %15 : vector<2x8x1xf32>
    %21 = vector.shape_cast %20 : vector<2x8x1xf32> to vector<1x2x8x1xf32>
    %cst_7 = arith.constant dense<0.000000e+00> : vector<1xf32>
    %22 = vector.multi_reduction <add>, %21, %cst_7 [1, 2, 3] : vector<1x2x8x1xf32> to vector<1xf32>
    %23 = vector.shape_cast %22 : vector<1xf32> to vector<1x1x1x1xf32>
    %24 = vector.extract %23[0, 0, 0, 0] : f32 from vector<1x1x1x1xf32>
    %c0_8 = arith.constant 0 : index
    %c0_9 = arith.constant 0 : index
    %25 = memref.load %arg4[%c0_8, %c0_9] : memref<1x1xf32, #tpu.memory_space<smem>>
    memref.store %24, %arg4[%c0_8, %c0_9] : memref<1x1xf32, #tpu.memory_space<smem>>
    return
  }
  func.func @transform_0(%arg0: i32, %arg1: i32) -> (i32, i32, i32) {
    %c0_i32 = arith.constant 0 : i32
    %c0_i32_0 = arith.constant 0 : i32
    return %c0_i32, %arg0, %arg1 : i32, i32, i32
  }
  func.func @transform_1(%arg0: i32, %arg1: i32) -> (i32, i32) {
    %c0_i32 = arith.constant 0 : i32
    return %arg0, %arg1 : i32, i32
  }
  func.func @transform_2(%arg0: i32, %arg1: i32) -> (i32, i32) {
    %c0_i32 = arith.constant 0 : i32
    %c0_i32_0 = arith.constant 0 : i32
    return %arg0, %c0_i32 : i32, i32
  }
}

</mosaic_0001>

<llo_original>
// kernel: tpu_custom_call.1
$region0: #{tpu_custom_call.1}
  #allocation0 [shape = 'u32[]', space=smem, size = 0x4, offset = 0x4, fixed_abs, tag = 'smem constant byte address 0x4 - core index']
  #allocation1 [shape = 'u32[144,128]{1,0:T(1,128)}', space=vmem, size = 0x12000, scoped, tag = 'internal scratch']
  %s0 = inlined_call_operand.hbm [shape: f32[2,8,128], index: 0, kind: input, shape index: {}]
  %s1 = inlined_call_operand.hbm [shape: f32[8,128], index: 1, kind: input, shape index: {}]
  %s2 = inlined_call_operand.hbm [shape: f32[1,1], index: 2, kind: output, shape index: {}]
  %s3 = sld [smem:[#allocation0]]
  $region26: #{tpu_custom_call.1} parent=0
    _
  %s5 = ssub.s32 1, %s3
  %s6 = scalar_select 0, %s5, %s3
  $region1: #{tpu_custom_call.1} parent=0
    #allocation2 [shape = 'u8[8192]{0}', space=vmem, size = 0x2000, scoped, tag = 'input window, operand 0, single buffered']
    #allocation3 [shape = 's32[1]{0}', space=sflag, size = 0x4, scoped, tag = 'scoped memory for tpu_custom_call.1']
    #allocation4 [shape = 's32[1]{0}', space=sflag, size = 0x4, scoped, tag = 'scoped memory for tpu_custom_call.1']
    #allocation5 [shape = 'u8[4096]{0}', space=vmem, size = 0x1000, scoped, tag = 'input window, operand 1, single buffered']
    #allocation6 [shape = 's32[1]{0}', space=sflag, size = 0x4, scoped, tag = 'scoped memory for tpu_custom_call.1']
    #allocation7 [shape = 'u8[512]{0}', space=smem, size = 0x200, scoped, tag = 'output window, operand 0, single buffered']
    %7 = vsyncpa [#allocation3], 0
    %8 = vsyncpa [#allocation6], 0
    %9 = vsyncpa [#allocation4], 0
    // Predicated region
    $region2: #{tpu_custom_call.1} parent=1 // pred_check
      _
    $region3: #{tpu_custom_call.1} parent=1 // pred_check_branch
      %11 = sbr.rel (0) target = $region5
    $region4: #{tpu_custom_call.1} parent=1 // pred_region
      %s13 = ssub.s32 256, 256
      %14 = vsyncadd [#allocation3], %s13
      %s15 = sshll.u32 [#allocation2], 4
      %s16 = int_to_ptr.vmem [resolvable:$true] %s15
      %21 = dma.hbm_to_vmem [thread:$0]  %s0, 256, %s16, [#allocation3], 128, 128, 8
    $region5: #{tpu_custom_call.1} parent=1 // pred_fallthru
      _
    // Predicated region
    $region6: #{tpu_custom_call.1} parent=1 // pred_check
      _
    $region7: #{tpu_custom_call.1} parent=1 // pred_check_branch
      %23 = sbr.rel (0) target = $region9
    $region8: #{tpu_custom_call.1} parent=1 // pred_region
      %s25 = ssub.s32 128, 128
      %26 = vsyncadd [#allocation6], %s25
      %s28 = sshll.u32 [#allocation5], 4
      %s29 = int_to_ptr.vmem [resolvable:$true] %s28
      %31 = dma.hbm_to_vmem [thread:$0]  %s1, 128, %s29, [#allocation6]
    $region9: #{tpu_custom_call.1} parent=1 // pred_fallthru
      _
    // Predicated region
    $region10: #{tpu_custom_call.1} parent=1 // pred_check
      _
    $region11: #{tpu_custom_call.1} parent=1 // pred_check_branch
      %33 = sbr.rel (0) target = $region13
    $region12: #{tpu_custom_call.1} parent=1 // pred_region
      %34 = dma.done [#allocation3], 256
    $region13: #{tpu_custom_call.1} parent=1 // pred_fallthru
      _
    // Predicated region
    $region14: #{tpu_custom_call.1} parent=1 // pred_check
      _
    $region15: #{tpu_custom_call.1} parent=1 // pred_check_branch
      %36 = sbr.rel (0) target = $region17
    $region16: #{tpu_custom_call.1} parent=1 // pred_region
      %37 = dma.done [#allocation6], 128
    $region17: #{tpu_custom_call.1} parent=1 // pred_fallthru
      _
    %v38 = vld [vmem:[#allocation2] sm:$0xff]
    %v39 = vld [vmem:[#allocation2 + $0x8] sm:$0xff]
    %v40 = vld [vmem:[#allocation5] sm:$0xff]
    %41 = vmax.xlane.f32.xlu0 %v38
    %v42 = vpop.xlane.xlu0 %41
    %43 = vmax.xlane.f32.xlu0 %v39
    %v44 = vpop.xlane.xlu0 %43
    %v45 = vsub.f32 %v38, %v42
    %v46 = vsub.f32 %v39, %v44
    %v47 = vmul.f32 %v45, 1.442695
    %v48 = vpow.pop %v47
    %v49 = vmul.f32 %v46, 1.442695
    %v50 = vpow.pop %v49
    %51 = vadd.xlane.f32.xlu0 %v48
    %v52 = vpop.xlane.xlu0 %51
    %53 = vadd.xlane.f32.xlu0 %v50
    %v54 = vpop.xlane.xlu0 %53
    %55 = vadd.xlane.f32.xlu0 %v40
    %v56 = vpop.xlane.xlu0 %55
    %v57 = vmul.f32 %v40, %v45
    %v58 = vmul.f32 %v40, %v46
    %59 = vadd.xlane.f32.xlu0 %v57
    %v60 = vpop.xlane.xlu0 %59
    %61 = vadd.xlane.f32.xlu0 %v58
    %v62 = vpop.xlane.xlu0 %61
    %v63 = vlog2.pop %v52
    %v64 = vmul.f32 %v63, 0.6931472
    %v65 = vlog2.pop %v54
    %v66 = vmul.f32 %v65, 0.6931472
    %v67 = vmul.f32 %v64, %v56
    %v68 = vmul.f32 %v66, %v56
    %v69 = vsub.f32 %v67, %v60
    %v70 = vsub.f32 %v68, %v62
    %vm71 = vcmask 7168
    %v72 = vsel %vm71, %v69, 0.0
    %v73 = vsel %vm71, %v70, 0.0
    %v74 = vadd.f32 %v72, %v73
    %75 = vadd.xlane.f32.xlu0 %v74
    %v76 = vpop.xlane.xlu0 %75
    %v77 = vrot.slane %v76, 4
    %v78 = vadd.f32 %v76, %v77
    %v79 = vrot.slane %v78, 2
    %v80 = vadd.f32 %v78, %v79
    %v81 = vrot.slane %v80, 1
    %v82 = vadd.f32 %v80, %v81
    %s83 = vtos %v82
    %s84 = scalar_lea.smem [#allocation7], 0
    %85 = sst [smem:[%s84]] %s83
    // Predicated region
    $region18: #{tpu_custom_call.1} parent=1 // pred_check
      _
    $region19: #{tpu_custom_call.1} parent=1 // pred_check_branch
      %87 = sbr.rel (0) target = $region21
    $region20: #{tpu_custom_call.1} parent=1 // pred_region
      %s89 = ssub.s32 16, 16
      %90 = vsyncadd [#allocation4], %s89
      %93 = dma.smem_to_hbm [#allocation7], 16, %s2, [#allocation4]
    $region21: #{tpu_custom_call.1} parent=1 // pred_fallthru
      _
    // Predicated region
    $region22: #{tpu_custom_call.1} parent=1 // pred_check
      _
    $region23: #{tpu_custom_call.1} parent=1 // pred_check_branch
      %95 = sbr.rel (0) target = $region25
    $region24: #{tpu_custom_call.1} parent=1 // pred_region
      %96 = dma.done [#allocation4], 16
    $region25: #{tpu_custom_call.1} parent=1 // pred_fallthru
      _
    %97 = sfence
    %98 = vsyncpa [#allocation3], 1
    %99 = vsyncpa [#allocation6], 1
    %100 = vsyncpa [#allocation4], 1

</llo_original>
